<compile_context>
chip_gen: v7x
topology: tpu7x:2x2x1
jax: 0.10.0
libtpu: 0.0.40
codegen_flags: <defaults>
</compile_context>

<pallas_src>
import math
from functools import partial

import jax
import jax.numpy as jnp
from jax import lax
from jax.experimental import pallas as pl
from jax.experimental.pallas import tpu as pltpu

# MXU-operand dtype. bf16 halves weight DMA and ~2x's MXU throughput on
# v6e/v7x; accumulation stays f32 (preferred_element_type) and all elementwise
# math (LN / softmax / QuickGELU) stays f32. Set to jnp.float32 to bit-match
# an all-f32 reference.
MM_DTYPE = jnp.bfloat16
NEG_INF = -1e30


def _layer_norm_f32(x, gamma, beta, eps=1e-5):
    mu = jnp.mean(x, axis=-1, keepdims=True)
    var = jnp.mean((x - mu) ** 2, axis=-1, keepdims=True)
    return (x - mu) * lax.rsqrt(var + eps) * gamma + beta


# ---------------------------------------------------------------------------
# Head split / merge.
#   "einshape": reshape + lane-layout-aware relayout (preferred; no per-head
#               lane slices / concatenates per layer).
#   "slice":    previously validated per-head slice + concat fallback.
# ---------------------------------------------------------------------------
def _split_heads(t, Bt, S, n_head, hd, mode):
    """(Bt*S, n_head*hd) -> (Bt*n_head, S, hd)."""
    if mode == "einshape":
        t4 = t.reshape(Bt, S, n_head, hd)
        t4 = pltpu.einshape("bshd->bhsd", t4)
        return t4.reshape(Bt * n_head, S, hd)
    return jnp.concatenate(
        [t[:, h * hd:(h + 1) * hd].reshape(Bt, S, hd) for h in range(n_head)],
        axis=0)


def _merge_heads(t, Bt, S, n_head, hd, mode):
    """(Bt*n_head, S, hd) -> (Bt*S, n_head*hd); inverse of _split_heads."""
    if mode == "einshape":
        t4 = t.reshape(Bt, n_head, S, hd)
        t4 = pltpu.einshape("bhsd->bshd", t4)
        return t4.reshape(Bt * S, n_head * hd)
    return jnp.concatenate(
        [t[h * Bt:(h + 1) * Bt].reshape(Bt * S, hd) for h in range(n_head)],
        axis=-1)


# ---------------------------------------------------------------------------
# Fused text encoder kernel: grid = (batch_tiles, layers).
# All layers + ln_final + EOT gather + text_projection in one pallas_call.
# ---------------------------------------------------------------------------
def text_transformer_kernel(x_ref, eot_ref,
                            g1_ref, b1_ref, w_in_ref, b_in_ref,
                            w_out_ref, b_out_ref,
                            g2_ref, b2_ref, w_fc_ref, b_fc_ref,
                            w_pr_ref, b_pr_ref,
                            gf_ref, bf_ref, proj_ref,
                            txt_ref, x_vmem, mask_vmem,
                            *, n_head, head_split):
    l = pl.program_id(1)
    n_layers = pl.num_programs(1)
    Bt, S, D = x_ref.shape
    E = proj_ref.shape[-1]
    M = Bt * S
    hd = D // n_head
    scale = 1.0 / math.sqrt(hd)

    # First layer of each batch tile: pull activations into the resident VMEM
    # scratch and build the (S, S) additive causal-mask bias once (reused by
    # every layer instead of re-generating iota/compare/select per layer).
    @pl.when(l == 0)
    def _():
        x_vmem[...] = x_ref[...].reshape(M, D).astype(jnp.float32)
        row = lax.broadcasted_iota(jnp.int32, (S, S), 0)
        col = lax.broadcasted_iota(jnp.int32, (S, S), 1)
        mask_vmem[...] = jnp.where(col > row, NEG_INF, 0.0).astype(jnp.float32)

    x = x_vmem[...]                                            # (M, D) f32

    # ---- attention branch (ln_1 in f32) ------------------------------------
    h1 = _layer_norm_f32(x, g1_ref[0], b1_ref[0])
    qkv = jnp.dot(h1.astype(MM_DTYPE), w_in_ref[0],
                  preferred_element_type=jnp.float32) + b_in_ref[0]   # (M, 3D)
    q = (qkv[:, 0:D] * scale).astype(MM_DTYPE)
    k = qkv[:, D:2 * D].astype(MM_DTYPE)
    v = qkv[:, 2 * D:3 * D].astype(MM_DTYPE)

    qh = _split_heads(q, Bt, S, n_head, hd, head_split)        # (Bt*H, S, hd)
    kh = _split_heads(k, Bt, S, n_head, hd, head_split)
    vh = _split_heads(v, Bt, S, n_head, hd, head_split)

    s = jnp.einsum('bqd,bkd->bqk', qh, kh,
                   preferred_element_type=jnp.float32)         # (Bt*H, S, S)
    s = s + mask_vmem[...][None, :, :]
    s = s - jnp.max(s, axis=-1, keepdims=True)
    p = jnp.exp(s)
    p = p * pl.reciprocal(jnp.sum(p, axis=-1, keepdims=True), approx=True)

    oh = jnp.einsum('bqk,bkd->bqd', p.astype(MM_DTYPE), vh,
                    preferred_element_type=jnp.float32)        # (Bt*H, S, hd)
    attn = _merge_heads(oh.astype(MM_DTYPE), Bt, S, n_head, hd, head_split)
    attn = jnp.dot(attn, w_out_ref[0],
                   preferred_element_type=jnp.float32) + b_out_ref[0]
    x = x + attn

    # ---- MLP branch ---------------------------------------------------------
    h2 = _layer_norm_f32(x, g2_ref[0], b2_ref[0])
    f = jnp.dot(h2.astype(MM_DTYPE), w_fc_ref[0],
                preferred_element_type=jnp.float32) + b_fc_ref[0]
    f = f * jax.nn.sigmoid(1.702 * f)                          # QuickGELU (f32)
    f = jnp.dot(f.astype(MM_DTYPE), w_pr_ref[0],
                preferred_element_type=jnp.float32) + b_pr_ref[0]
    x = x + f

    x_vmem[...] = x

    # ---- fused text head on the last layer ----------------------------------
    @pl.when(l == n_layers - 1)
    def _():
        xs = x.reshape(Bt, S, D)
        x_eot = jnp.sum(xs * eot_ref[...].astype(jnp.float32), axis=1)  # (Bt, D)
        xn = _layer_norm_f32(x_eot, gf_ref[...], bf_ref[...])
        emb = jnp.dot(xn.astype(MM_DTYPE), proj_ref[...],
                      preferred_element_type=jnp.float32)               # (Bt, E)
        # TODO(synk): E < 128 at demo width -> masked partial store; production
        # embed dims (512+) give lane-dense stores.
        txt_ref[...] = emb.reshape(Bt, 1, E).astype(txt_ref.dtype)


def _pick_batch_tile(B, max_bt=8):
    # >= 2 batch tiles so the "parallel" grid axis can be split across the two
    # TensorCores on v7x.  TODO(synk): on single-core chips (v5e/v6e) a larger
    # Bt (fewer tiles) halves per-layer weight re-streaming; select per-chip.
    if B < 2:
        return B
    cap = max(1, min(max_bt, B // 2))
    for bt in range(cap, 0, -1):
        if B % bt == 0:
            return bt
    return 1


def _text_transformer_call(x, eot_oh, wts, ln_f_g, ln_f_b, text_proj, n_head,
                           head_split):
    """x: (B, S, D) f32; eot_oh: (B, S, 1) one-hot; wts: stacked (L, ...)."""
    B, S, D = x.shape
    E = text_proj.shape[1]
    L = wts["w_in"].shape[0]
    Bt = _pick_batch_tile(B)
    nbt = B // Bt

    names = ["g1", "b1", "w_in", "b_in", "w_out", "b_out",
             "g2", "b2", "w_fc", "b_fc", "w_pr", "b_pr"]
    big = {"w_in", "w_out", "w_fc", "w_pr"}
    # Stream the large matmul weights in MM_DTYPE (bf16 halves HBM->VMEM DMA);
    # LN params / biases stay f32.
    layer_args = [wts[n].astype(MM_DTYPE) if n in big else wts[n]
                  for n in names]
    proj_mm = text_proj.astype(MM_DTYPE)

    in_specs = [pl.BlockSpec((Bt, S, D), lambda b, l: (b, 0, 0)),     # x
                pl.BlockSpec((Bt, S, 1), lambda b, l: (b, 0, 0))]     # EOT 1-hot
    in_specs += [pl.BlockSpec((1,) + a.shape[1:], lambda b, l: (l, 0, 0))
                 for a in layer_args]                                  # layer wts
    in_specs += [pl.BlockSpec((1, D), lambda b, l: (0, 0)),           # ln_final g
                 pl.BlockSpec((1, D), lambda b, l: (0, 0)),           # ln_final b
                 pl.BlockSpec((D, E), lambda b, l: (0, 0))]           # text proj

    # VMEM budget: resident activation + double-buffered per-layer weight set
    # + attention temporaries, clamped to the smallest physical VMEM (64 MiB
    # on v7x).  TODO(synk): at production widths on v7x additionally K/N-tile
    # w_fc / w_pr (or pipeline_mode=pl.Buffered(1)) to stay within 64 MiB.
    wset = sum(math.prod(a.shape[1:]) * a.dtype.itemsize for a in layer_args)
    head_bytes = (ln_f_g.size + ln_f_b.size) * 4 \
        + proj_mm.size * proj_mm.dtype.itemsize
    act = (Bt * S * D * 4) * 8 + (n_head * Bt * S * S * 4) * 3 \
        + Bt * S * 3 * D * 4 + S * S * 4
    need = 2 * wset + head_bytes + act
    vmem_limit = int(min(64 * 1024 * 1024, max(32 * 1024 * 1024, 2 * need)))

    # Advisory cost estimate (helps XLA schedule the surrounding gather/argmax).
    mm_flops = (2 * B * S * D * 3 * D + 2 * B * S * D * D
                + 4 * B * S * D * 4 * D + 4 * B * S * S * D)
    cost = pl.CostEstimate(
        flops=int(L * mm_flops + 2 * B * D * E),
        transcendentals=int(L * (B * n_head * S * S + B * S * 4 * D)),
        bytes_accessed=int(nbt * wset + x.size * 4 + eot_oh.size * 4
                           + head_bytes + B * E * 4))

    out = pl.pallas_call(
        partial(text_transformer_kernel, n_head=n_head, head_split=head_split),
        out_shape=jax.ShapeDtypeStruct((B, 1, E), jnp.float32),
        grid=(nbt, L),
        in_specs=in_specs,
        out_specs=pl.BlockSpec((Bt, 1, E), lambda b, l: (b, 0, 0)),
        scratch_shapes=[pltpu.VMEM((Bt * S, D), jnp.float32),   # resident acts
                        pltpu.VMEM((S, S), jnp.float32)],       # causal bias
        compiler_params=pltpu.CompilerParams(
            dimension_semantics=("parallel", "arbitrary"),
            vmem_limit_bytes=vmem_limit),
        cost_estimate=cost,
    )(x, eot_oh, *layer_args, ln_f_g, ln_f_b, proj_mm)
    return out[:, 0, :]


def _text_transformer_reference(x, eot_oh, wts, gf, bf, proj, n_head):
    """Pure-JAX f32 reference of the text encoder (probe / validation only)."""
    B, S, D = x.shape
    hd = D // n_head
    mask = jnp.where(jnp.triu(jnp.ones((S, S), dtype=bool), 1), -jnp.inf, 0.0)
    for l in range(wts["w_in"].shape[0]):
        h = _layer_norm_f32(x, wts["g1"][l], wts["b1"][l])
        qkv = h @ wts["w_in"][l] + wts["b_in"][l]
        q, k, v = qkv[..., :D], qkv[..., D:2 * D], qkv[..., 2 * D:]
        q = q.reshape(B, S, n_head, hd).transpose(0, 2, 1, 3) / math.sqrt(hd)
        k = k.reshape(B, S, n_head, hd).transpose(0, 2, 1, 3)
        v = v.reshape(B, S, n_head, hd).transpose(0, 2, 1, 3)
        a = jax.nn.softmax(jnp.einsum('bhqd,bhkd->bhqk', q, k) + mask, axis=-1)
        o = jnp.einsum('bhqk,bhkd->bhqd', a, v)
        o = o.transpose(0, 2, 1, 3).reshape(B, S, D)
        x = x + o @ wts["w_out"][l] + wts["b_out"][l]
        h2 = _layer_norm_f32(x, wts["g2"][l], wts["b2"][l])
        f = h2 @ wts["w_fc"][l] + wts["b_fc"][l]
        f = f * jax.nn.sigmoid(1.702 * f)
        x = x + f @ wts["w_pr"][l] + wts["b_pr"][l]
    x_eot = jnp.sum(x * eot_oh, axis=1)                          # (B, D)
    return _layer_norm_f32(x_eot, gf, bf) @ proj


_HEAD_SPLIT_MODE = None


def run_text_transformer(x, eot_oh, wts, ln_f_g, ln_f_b, text_proj, n_head):
    """One-time capability/correctness probe, then the cached fast path."""
    global _HEAD_SPLIT_MODE
    if _HEAD_SPLIT_MODE is not None:
        return _text_transformer_call(x, eot_oh, wts, ln_f_g, ln_f_b,
                                      text_proj, n_head, _HEAD_SPLIT_MODE)
    ref = _text_transformer_reference(x, eot_oh, wts, ln_f_g, ln_f_b,
                                      text_proj, n_head)
    err = None
    for mode in ("einshape", "slice"):
        try:
            out = _text_transformer_call(x, eot_oh, wts, ln_f_g, ln_f_b,
                                         text_proj, n_head, mode)
            jax.block_until_ready(out)
        except Exception as e:          # Mosaic capability fallback
            err = e
            continue
        if bool(jnp.max(jnp.abs(out - ref)) < 0.2):   # bf16 noise << 0.2
            _HEAD_SPLIT_MODE = mode
            return out
        err = AssertionError(f"head_split={mode}: numerics mismatch")
    raise err


# ---------------------------------------------------------------------------
# Synthetic visual encoder, K-tiled over the flattened pixel dim.
# ---------------------------------------------------------------------------
def image_encode_kernel(x_ref, w_vis_ref, b_vis_ref, proj_ref, o_ref, feat_acc):
    k = pl.program_id(0)

    @pl.when(k == 0)
    def _():
        feat_acc[...] = jnp.zeros_like(feat_acc)

    feat_acc[...] += jnp.dot(x_ref[...].astype(MM_DTYPE), w_vis_ref[...],
                             preferred_element_type=jnp.float32)

    @pl.when(k == pl.num_programs(0) - 1)
    def _():
        feat = feat_acc[...] + b_vis_ref[...]
        o_ref[...] = jnp.dot(feat.astype(MM_DTYPE), proj_ref[...],
                             preferred_element_type=jnp.float32).astype(o_ref.dtype)


def run_image_encode(img_flat, w_vis, b_vis, image_proj, *, k_tile=512):
    B, F = img_flat.shape
    Vw = w_vis.shape[1]
    E = image_proj.shape[1]
    kt = min(k_tile, F)
    while F % kt != 0:
        kt //= 2
    w_vis_mm = w_vis.astype(MM_DTYPE)
    proj_mm = image_proj.astype(MM_DTYPE)
    return pl.pallas_call(
        image_encode_kernel,
        out_shape=jax.ShapeDtypeStruct((B, E), jnp.float32),
        grid=(F // kt,),
        in_specs=[pl.BlockSpec((B, kt), lambda k: (0, k)),
                  pl.BlockSpec((kt, Vw), lambda k: (k, 0)),
                  pl.BlockSpec((1, Vw), lambda k: (0, 0)),
                  pl.BlockSpec((Vw, E), lambda k: (0, 0))],
        out_specs=pl.BlockSpec((B, E), lambda k: (0, 0)),
        scratch_shapes=[pltpu.VMEM((B, Vw), jnp.float32)],
        compiler_params=pltpu.CompilerParams(
            dimension_semantics=("arbitrary",)),
    )(img_flat, w_vis_mm, b_vis, proj_mm)


# ---------------------------------------------------------------------------
# Parameters (deterministic, built in-script) and CLIP forward.
# ---------------------------------------------------------------------------
def build_params(key, *, embed_dim, vision_width, img_feat_dim, context_length,
                 vocab_size, width, heads, layers):
    ks = iter(jax.random.split(key, 8 + 4 * layers))
    p = {}
    p["token_embedding"] = 0.02 * jax.random.normal(
        next(ks), (vocab_size, width), jnp.float32)
    p["positional_embedding"] = 0.01 * jax.random.normal(
        next(ks), (context_length, width), jnp.float32)

    proj_std = width ** -0.5 * (2 * layers) ** -0.5
    attn_std = width ** -0.5
    fc_std = (2 * width) ** -0.5

    w_in, w_out, w_fc, w_pr = [], [], [], []
    for _ in range(layers):
        # PyTorch Linear weights are (out, in); store pre-transposed to
        # (in, out) so kernels compute x @ W.
        w_in.append((attn_std * jax.random.normal(next(ks), (3 * width, width))).T)
        w_out.append((proj_std * jax.random.normal(next(ks), (width, width))).T)
        w_fc.append((fc_std * jax.random.normal(next(ks), (4 * width, width))).T)
        w_pr.append((proj_std * jax.random.normal(next(ks), (width, 4 * width))).T)

    L = layers
    p["blocks"] = {
        "w_in":  jnp.stack(w_in).astype(jnp.float32),          # (L, D, 3D)
        "b_in":  jnp.zeros((L, 1, 3 * width), jnp.float32),
        "w_out": jnp.stack(w_out).astype(jnp.float32),         # (L, D, D)
        "b_out": jnp.zeros((L, 1, width), jnp.float32),
        "w_fc":  jnp.stack(w_fc).astype(jnp.float32),          # (L, D, 4D)
        "b_fc":  jnp.zeros((L, 1, 4 * width), jnp.float32),
        "w_pr":  jnp.stack(w_pr).astype(jnp.float32),          # (L, 4D, D)
        "b_pr":  jnp.zeros((L, 1, width), jnp.float32),
        "g1": jnp.ones((L, 1, width), jnp.float32),
        "b1": jnp.zeros((L, 1, width), jnp.float32),
        "g2": jnp.ones((L, 1, width), jnp.float32),
        "b2": jnp.zeros((L, 1, width), jnp.float32),
    }

    p["ln_final_g"] = jnp.ones((1, width), jnp.float32)
    p["ln_final_b"] = jnp.zeros((1, width), jnp.float32)
    p["image_projection"] = (vision_width ** -0.5 * jax.random.normal(
        next(ks), (vision_width, embed_dim))).astype(jnp.float32)
    p["text_projection"] = (width ** -0.5 * jax.random.normal(
        next(ks), (width, embed_dim))).astype(jnp.float32)
    p["logit_scale"] = jnp.asarray(math.log(1.0 / 0.07), jnp.float32)

    # TODO(synk): the reference passes an arbitrary `vision_model`; a minimal
    # linear encoder with a dummy attention map is used since none is specified.
    p["w_vis"] = (img_feat_dim ** -0.5 * jax.random.normal(
        next(ks), (img_feat_dim, vision_width))).astype(jnp.float32)
    p["b_vis"] = jnp.zeros((1, vision_width), jnp.float32)
    return p


def clip_forward(params, image, text, *, heads):
    B = image.shape[0]

    # ---- encode_image (synthetic visual encoder + dummy attention map) -----
    img_flat = image.reshape(B, -1).astype(jnp.float32)
    image_embed = run_image_encode(img_flat, params["w_vis"], params["b_vis"],
                                   params["image_projection"])
    n_tok = img_flat.shape[1] // image.shape[1]
    attention = jnp.full((B, n_tok), 1.0 / n_tok, jnp.float32)

    # ---- encode_text --------------------------------------------------------
    x = jnp.take(params["token_embedding"], text, axis=0)       # (B, S, D)
    x = x + params["positional_embedding"][None, :, :]
    S = text.shape[1]
    eot_idx = jnp.argmax(text, axis=-1)                          # (B,)
    eot_oh = jax.nn.one_hot(eot_idx, S, dtype=jnp.float32)[:, :, None]  # (B,S,1)
    text_embed = run_text_transformer(x, eot_oh, params["blocks"],
                                      params["ln_final_g"], params["ln_final_b"],
                                      params["text_projection"], heads)

    return {"image_embed": (image_embed, attention),
            "text_embed": text_embed,
            "logit_scale": jnp.exp(params["logit_scale"])}


# ---------------------------------------------------------------------------
if __name__ == "__main__":
    B = 2
    C, Hh, Ww = 4, 16, 16
    embed_dim = 16
    vision_width = 32
    context_length = 8
    vocab_size = 64
    transformer_width = 32
    transformer_heads = 4
    transformer_layers = 2

    key = jax.random.PRNGKey(0)
    k_img, k_txt, k_par = jax.random.split(key, 3)

    image = jax.random.normal(k_img, (B, C, Hh, Ww), jnp.float32)      # NCHW
    text = jax.random.randint(k_txt, (B, context_length), 0, vocab_size,
                              jnp.int32)

    params = build_params(k_par, embed_dim=embed_dim, vision_width=vision_width,
                          img_feat_dim=C * Hh * Ww,
                          context_length=context_length,
                          vocab_size=vocab_size, width=transformer_width,
                          heads=transformer_heads, layers=transformer_layers)

    out = clip_forward(params, image, text, heads=transformer_heads)
    jax.block_until_ready(out)

    assert out["image_embed"][0].shape == (B, embed_dim)
    assert out["text_embed"].shape == (B, embed_dim)
    assert out["logit_scale"].shape == ()

    # Loose numerical cross-check vs a pure-JAX f32 reference (bf16 MXU
    # operands + approx reciprocal => small, bounded differences expected).
    img_ref = (image.reshape(B, -1) @ params["w_vis"] + params["b_vis"]) \
        @ params["image_projection"]
    x_emb = jnp.take(params["token_embedding"], text, axis=0) \
        + params["positional_embedding"][None, :, :]
    eot_oh = jax.nn.one_hot(jnp.argmax(text, axis=-1), context_length,
                            dtype=jnp.float32)[:, :, None]
    txt_ref = _text_transformer_reference(x_emb, eot_oh, params["blocks"],
                                          params["ln_final_g"],
                                          params["ln_final_b"],
                                          params["text_projection"],
                                          transformer_heads)
    assert float(jnp.max(jnp.abs(out["image_embed"][0] - img_ref))) < 0.2
    assert float(jnp.max(jnp.abs(out["text_embed"] - txt_ref))) < 0.2

    print("KERNEL_OK")
</pallas_src>

<mosaic_0001>
module attributes {stable_mosaic.version = 11 : i64} {
  func.func @image_encode_kernel(%arg0: i32, %arg1: memref<2x512xf32, #tpu.memory_space<vmem>>, %arg2: memref<512x32xbf16, #tpu.memory_space<vmem>>, %arg3: memref<1x32xf32, #tpu.memory_space<vmem>>, %arg4: memref<32x16xbf16, #tpu.memory_space<vmem>>, %arg5: memref<2x16xf32, #tpu.memory_space<vmem>>, %arg6: memref<2x32xf32, #tpu.memory_space<vmem>>) attributes {dimension_semantics = [#tpu.dimension_semantics<arbitrary>], iteration_bounds = array<i64: 2>, scalar_prefetch = 0 : i64, scratch_operands = 1 : i64, tpu.core_type = #tpu.core_type<tc>, window_params = [{transform_indices = @transform_0, window_bounds = array<i64: 2, 512>}, {transform_indices = @transform_1, window_bounds = array<i64: 512, 32>}, {pipeline_mode = #tpu.pipeline_mode<synchronous>, transform_indices = @transform_2, window_bounds = array<i64: 1, 32>}, {pipeline_mode = #tpu.pipeline_mode<synchronous>, transform_indices = @transform_3, window_bounds = array<i64: 32, 16>}, {pipeline_mode = #tpu.pipeline_mode<synchronous>, transform_indices = @transform_4, window_bounds = array<i64: 2, 16>}]} {
    %c0_i32 = arith.constant 0 : i32
    %0 = arith.cmpi eq, %arg0, %c0_i32 : i32
    %1 = arith.extui %0 : i1 to i32
    %c0_i32_0 = arith.constant 0 : i32
    %2 = arith.cmpi ne, %1, %c0_i32_0 : i32
    scf.if %2 {
      %cst_9 = arith.constant 0.000000e+00 : f32
      %13 = vector.broadcast %cst_9 : f32 to vector<2x32xf32>
      %c0_10 = arith.constant 0 : index
      %c0_11 = arith.constant 0 : index
      %14 = vector.load %arg6[%c0_10, %c0_11] : memref<2x32xf32, #tpu.memory_space<vmem>>, vector<2x32xf32>
      tpu.vector_store %arg6[%c0_10, %c0_11], %13 {strides = array<i32>} : memref<2x32xf32, #tpu.memory_space<vmem>>, vector<2x32xf32>,
    } else {
    }
    %c0 = arith.constant 0 : index
    %c0_1 = arith.constant 0 : index
    %3 = vector.load %arg6[%c0, %c0_1] : memref<2x32xf32, #tpu.memory_space<vmem>>, vector<2x32xf32>
    %c0_2 = arith.constant 0 : index
    %c0_3 = arith.constant 0 : index
    %4 = vector.load %arg1[%c0_2, %c0_3] : memref<2x512xf32, #tpu.memory_space<vmem>>, vector<2x512xf32>
    %5 = arith.truncf %4 : vector<2x512xf32> to vector<2x512xbf16>
    %c0_4 = arith.constant 0 : index
    %c0_5 = arith.constant 0 : index
    %6 = vector.load %arg2[%c0_4, %c0_5] : memref<512x32xbf16, #tpu.memory_space<vmem>>, vector<512x32xbf16>
    %cst = arith.constant dense<0.000000e+00> : vector<2x32xf32>
    %7 = tpu.matmul %5, %6, %cst {dimension_numbers = #tpu.dot_dimension_numbers<[1], [0], [0], [1], [0, 0, 1, 1], [], []>} : vector<2x512xbf16>, vector<512x32xbf16>, vector<2x32xf32> -> vector<2x32xf32>
    %8 = arith.addf %3, %7 : vector<2x32xf32>
    %c0_6 = arith.constant 0 : index
    %c0_7 = arith.constant 0 : index
    %9 = vector.load %arg6[%c0_6, %c0_7] : memref<2x32xf32, #tpu.memory_space<vmem>>, vector<2x32xf32>
    tpu.vector_store %arg6[%c0_6, %c0_7], %8 {strides = array<i32>} : memref<2x32xf32, #tpu.memory_space<vmem>>, vector<2x32xf32>,
    %c1_i32 = arith.constant 1 : i32
    %10 = arith.cmpi eq, %arg0, %c1_i32 : i32
    %11 = arith.extui %10 : i1 to i32
    %c0_i32_8 = arith.constant 0 : i32
    %12 = arith.cmpi ne, %11, %c0_i32_8 : i32
    scf.if %12 {
      %c0_9 = arith.constant 0 : index
      %c0_10 = arith.constant 0 : index
      %13 = vector.load %arg6[%c0_9, %c0_10] : memref<2x32xf32, #tpu.memory_space<vmem>>, vector<2x32xf32>
      %c0_11 = arith.constant 0 : index
      %c0_12 = arith.constant 0 : index
      %14 = vector.load %arg3[%c0_11, %c0_12] : memref<1x32xf32, #tpu.memory_space<vmem>>, vector<1x32xf32>
      %15 = vector.broadcast %14 : vector<1x32xf32> to vector<2x32xf32>
      %16 = arith.addf %13, %15 : vector<2x32xf32>
      %17 = arith.truncf %16 : vector<2x32xf32> to vector<2x32xbf16>
      %c0_13 = arith.constant 0 : index
      %c0_14 = arith.constant 0 : index
      %18 = vector.load %arg4[%c0_13, %c0_14] : memref<32x16xbf16, #tpu.memory_space<vmem>>, vector<32x16xbf16>
      %cst_15 = arith.constant dense<0.000000e+00> : vector<2x16xf32>
      %19 = tpu.matmul %17, %18, %cst_15 {dimension_numbers = #tpu.dot_dimension_numbers<[1], [0], [0], [1], [0, 0, 1, 1], [], []>} : vector<2x32xbf16>, vector<32x16xbf16>, vector<2x16xf32> -> vector<2x16xf32>
      %c0_16 = arith.constant 0 : index
      %c0_17 = arith.constant 0 : index
      %20 = vector.load %arg5[%c0_16, %c0_17] : memref<2x16xf32, #tpu.memory_space<vmem>>, vector<2x16xf32>
      tpu.vector_store %arg5[%c0_16, %c0_17], %19 {strides = array<i32>} : memref<2x16xf32, #tpu.memory_space<vmem>>, vector<2x16xf32>,
    } else {
    }
    return
  }
  func.func @transform_0(%arg0: i32) -> (i32, i32) {
    %c0_i32 = arith.constant 0 : i32
    %c0_i32_0 = arith.constant 0 : i32
    return %c0_i32, %arg0 : i32, i32
  }
  func.func @transform_1(%arg0: i32) -> (i32, i32) {
    %c0_i32 = arith.constant 0 : i32
    %c0_i32_0 = arith.constant 0 : i32
    return %arg0, %c0_i32 : i32, i32
  }
  func.func @transform_2(%arg0: i32) -> (i32, i32) {
    %c0_i32 = arith.constant 0 : i32
    %c0_i32_0 = arith.constant 0 : i32
    %c0_i32_1 = arith.constant 0 : i32
    return %c0_i32, %c0_i32_0 : i32, i32
  }
  func.func @transform_3(%arg0: i32) -> (i32, i32) {
    %c0_i32 = arith.constant 0 : i32
    %c0_i32_0 = arith.constant 0 : i32
    %c0_i32_1 = arith.constant 0 : i32
    return %c0_i32, %c0_i32_0 : i32, i32
  }
  func.func @transform_4(%arg0: i32) -> (i32, i32) {
    %c0_i32 = arith.constant 0 : i32
    %c0_i32_0 = arith.constant 0 : i32
    %c0_i32_1 = arith.constant 0 : i32
    return %c0_i32, %c0_i32_0 : i32, i32
  }
}

</mosaic_0001>

<llo_original>
// kernel: tpu_custom_call.1
$region0: #{tpu_custom_call.1}
  #allocation0 [shape = 'u32[]', space=smem, size = 0x4, offset = 0x4, fixed_abs, tag = 'smem constant byte address 0x4 - core index']
  #allocation1 [shape = 'u32[144,128]{1,0:T(1,128)}', space=vmem, size = 0x12000, scoped, tag = 'internal scratch']
  #allocation2 [shape = 'f32[2,32]{1,0:T(2,128)}', space=vmem, size = 0x400, scoped, tag = 'scratch operand']
  %s0 = inlined_call_operand.vmem [shape: f32[2,1024], index: 0, kind: input, shape index: {}]
  %s1 = inlined_call_operand.vmem [shape: bf16[1024,32], index: 1, kind: input, shape index: {}]
  %s2 = inlined_call_operand.vmem [shape: f32[1,32], index: 2, kind: input, shape index: {}]
  %s3 = inlined_call_operand.vmem [shape: bf16[32,16], index: 3, kind: input, shape index: {}]
  %s4 = inlined_call_operand.hbm [shape: f32[2,16], index: 4, kind: output, shape index: {}]
  %s5 = sld [smem:[#allocation0]]
  $region57: #{tpu_custom_call.1} parent=0
    _
  %s7 = ssub.s32 1, %s5
  %s8 = scalar_select 0, %s7, %s5
  $region1: #{tpu_custom_call.1} parent=0
    #allocation3 [shape = 'u8[1024]{0}', space=vmem, size = 0x400, scoped, tag = 'output window, operand 0, single buffered']
    #allocation4 [shape = 's32[2]{0}', space=sflag, size = 0x8, scoped, tag = 'scoped memory for tpu_custom_call.1']
    %9 = vsyncpa [#allocation4], 0
    loop: start=0, step=1, limit=4
    $region2: #{tpu_custom_call.1} parent=1 // loop_pre_header
      _
    $region3: #{tpu_custom_call.1} parent=1 // loop_header
      %s11 = sphi 0, %s15
      %p12 = scmp.ge.s32.totalorder %s11, 4
      %s21 = sphi 0, %s23
      %s24 = sphi 0, %s21
      %s25 = sphi 0, %s24
      %s41 = sphi 0, %s25
      %s47 = sphi 0, %s49
      %s50 = sphi 0, %s47
      %s51 = sphi 0, %s50
      %s67 = sphi 0, %s51
      %s71 = sphi 0, %s71
      %s73 = sphi 0, %s71
      %s74 = sphi 0, %s73
      %s88 = sphi 0, %s74
      %s92 = sphi 0, %s92
      %s94 = sphi 0, %s92
      %s95 = sphi 0, %s94
      %s109 = sphi 0, %s95
      %s113 = sphi 0, %s113
      %s115 = sphi 0, %s113
      %s116 = sphi 0, %s115
      %s130 = sphi 0, %s116
    $region4: #{tpu_custom_call.1} parent=1 // loop_header_branch
      %14 = sbr.rel (%p12) target = $region8
    $region5: #{tpu_custom_call.1} parent=1 // loop_body
      %s16 = ssub.s32 %s11, 1
      %s17 = ssub.s32 %s11, 2
      %s18 = sadd.s32 %s11, 1
      %s19 = ssub.s32 %s11, %s18
      %p20 = scmp.eq.s32.totalorder %s19, 0
      %s22 = sadd.s32 %s21, 1
      %s23 = scalar_select %p20, %s21, %s22
      %p26 = pneg %p20
      %p27 = scmp.eq.s32.totalorder %s11, 1
      %p28 = por %p26, %p27
      %p29 = scmp.ne.s32.totalorder %s21, %s24
      %p30 = scmp.eq.s32.totalorder %s11, 0
      %p31 = por %p29, %p30
      %p32 = scmp.ne.s32.totalorder %s21, %s24
      %p33 = scmp.eq.s32.totalorder %s16, 1
      %p34 = por %p32, %p33
      %p35 = scmp.ne.s32.totalorder %s24, %s25
      %p36 = scmp.eq.s32.totalorder %s16, 0
      %p37 = por %p35, %p36
      %p38 = scmp.ne.s32.totalorder %s24, %s25
      %p39 = scmp.eq.s32.totalorder %s17, 1
      %p40 = por %p38, %p39
      %p42 = scmp.ne.s32.totalorder %s25, %s41
      %p43 = scmp.eq.s32.totalorder %s17, 0
      %p44 = por %p42, %p43
      %s45 = ssub.s32 %s11, %s18
      %p46 = scmp.eq.s32.totalorder %s45, 0
      %s48 = sadd.s32 %s47, 1
      %s49 = scalar_select %p46, %s47, %s48
      %p52 = pneg %p46
      %p53 = scmp.eq.s32.totalorder %s11, 1
      %p54 = por %p52, %p53
      %p55 = scmp.ne.s32.totalorder %s47, %s50
      %p56 = scmp.eq.s32.totalorder %s11, 0
      %p57 = por %p55, %p56
      %p58 = scmp.ne.s32.totalorder %s47, %s50
      %p59 = scmp.eq.s32.totalorder %s16, 1
      %p60 = por %p58, %p59
      %p61 = scmp.ne.s32.totalorder %s50, %s51
      %p62 = scmp.eq.s32.totalorder %s16, 0
      %p63 = por %p61, %p62
      %p64 = scmp.ne.s32.totalorder %s50, %s51
      %p65 = scmp.eq.s32.totalorder %s17, 1
      %p66 = por %p64, %p65
      %p68 = scmp.ne.s32.totalorder %s51, %s67
      %p69 = scmp.eq.s32.totalorder %s17, 0
      %p70 = por %p68, %p69
      %s72 = sadd.s32 %s71, 1
      %p75 = scmp.eq.s32.totalorder %s11, 1
      %p76 = scmp.ne.s32.totalorder %s71, %s73
      %p77 = scmp.eq.s32.totalorder %s11, 0
      %p78 = por %p76, %p77
      %p79 = scmp.ne.s32.totalorder %s71, %s73
      %p80 = scmp.eq.s32.totalorder %s16, 1
      %p81 = por %p79, %p80
      %p82 = scmp.ne.s32.totalorder %s73, %s74
      %p83 = scmp.eq.s32.totalorder %s16, 0
      %p84 = por %p82, %p83
      %p85 = scmp.ne.s32.totalorder %s73, %s74
      %p86 = scmp.eq.s32.totalorder %s17, 1
      %p87 = por %p85, %p86
      %p89 = scmp.ne.s32.totalorder %s74, %s88
      %p90 = scmp.eq.s32.totalorder %s17, 0
      %p91 = por %p89, %p90
      %s93 = sadd.s32 %s92, 1
      %p96 = scmp.eq.s32.totalorder %s11, 1
      %p97 = scmp.ne.s32.totalorder %s92, %s94
      %p98 = scmp.eq.s32.totalorder %s11, 0
      %p99 = por %p97, %p98
      %p100 = scmp.ne.s32.totalorder %s92, %s94
      %p101 = scmp.eq.s32.totalorder %s16, 1
      %p102 = por %p100, %p101
      %p103 = scmp.ne.s32.totalorder %s94, %s95
      %p104 = scmp.eq.s32.totalorder %s16, 0
      %p105 = por %p103, %p104
      %p106 = scmp.ne.s32.totalorder %s94, %s95
      %p107 = scmp.eq.s32.totalorder %s17, 1
      %p108 = por %p106, %p107
      %p110 = scmp.ne.s32.totalorder %s95, %s109
      %p111 = scmp.eq.s32.totalorder %s17, 0
      %p112 = por %p110, %p111
      %s114 = sadd.s32 %s113, 1
      %p117 = scmp.eq.s32.totalorder %s11, 1
      %p118 = scmp.ne.s32.totalorder %s113, %s115
      %p119 = scmp.eq.s32.totalorder %s11, 0
      %p120 = por %p118, %p119
      %p121 = scmp.ne.s32.totalorder %s113, %s115
      %p122 = scmp.eq.s32.totalorder %s16, 1
      %p123 = por %p121, %p122
      %p124 = scmp.ne.s32.totalorder %s115, %s116
      %p125 = scmp.eq.s32.totalorder %s16, 0
      %p126 = por %p124, %p125
      %p127 = scmp.ne.s32.totalorder %s115, %s116
      %p128 = scmp.eq.s32.totalorder %s17, 1
      %p129 = por %p127, %p128
      %p131 = scmp.ne.s32.totalorder %s116, %s130
      %p132 = scmp.eq.s32.totalorder %s17, 0
      %p133 = por %p131, %p132
      %p134 = scmp.le.s32.totalorder 1, %s11
      %p135 = scmp.lt.s32.totalorder %s11, 3
      %p136 = pnand %p134, %p135
      %p137 = pneg %p136
      // Predicated region
      $region9: #{tpu_custom_call.1} parent=5 // pred_check
        _
      $region10: #{tpu_custom_call.1} parent=5 // pred_check_branch
        %139 = sbr.rel (%p136) target = $region12
      $region11: #{tpu_custom_call.1} parent=5 // pred_region
        %s140 = ssub.s32 %s11, 1
        // Predicated region
        $region13: #{tpu_custom_call.1} parent=11 // pred_check
          %p141 = pneg %p84
        $region14: #{tpu_custom_call.1} parent=11 // pred_check_branch
          %143 = sbr.rel (%p141) target = $region16
        $region15: #{tpu_custom_call.1} parent=11 // pred_region
          _
        $region16: #{tpu_custom_call.1} parent=11 // pred_fallthru
          _
        // Predicated region
        $region17: #{tpu_custom_call.1} parent=11 // pred_check
          %p144 = pneg %p105
        $region18: #{tpu_custom_call.1} parent=11 // pred_check_branch
          %146 = sbr.rel (%p144) target = $region20
        $region19: #{tpu_custom_call.1} parent=11 // pred_region
          _
        $region20: #{tpu_custom_call.1} parent=11 // pred_fallthru
          _
      $region12: #{tpu_custom_call.1} parent=5 // pred_fallthru
        _
      %p147 = scmp.lt.s32.totalorder %s11, 2
      // Predicated region
      $region21: #{tpu_custom_call.1} parent=5 // pred_check
        %p148 = pneg %p147
      $region22: #{tpu_custom_call.1} parent=5 // pred_check_branch
        %150 = sbr.rel (%p148) target = $region24
      $region23: #{tpu_custom_call.1} parent=5 // pred_region
        // Predicated region
        $region25: #{tpu_custom_call.1} parent=23 // pred_check
          %p151 = pneg %p31
        $region26: #{tpu_custom_call.1} parent=23 // pred_check_branch
          %153 = sbr.rel (%p151) target = $region28
        $region27: #{tpu_custom_call.1} parent=23 // pred_region
          %s154 = smul.u32 4, %s11
          %p155 = scmp.lt.s32.totalorder %s154, 7
          %s156 = scalar_select %p155, %s154, 7
          %s157 = smul.addr %s156, 2
          %s158 = scalar_lea.vmem %s0, %s157
          %s159 = smul.u32 4, %s11
        $region28: #{tpu_custom_call.1} parent=23 // pred_fallthru
          _
        // Predicated region
        $region29: #{tpu_custom_call.1} parent=23 // pred_check
          %p160 = pneg %p57
        $region30: #{tpu_custom_call.1} parent=23 // pred_check_branch
          %162 = sbr.rel (%p160) target = $region32
        $region31: #{tpu_custom_call.1} parent=23 // pred_region
          %s163 = smul.u32 64, %s11
          %p164 = scmp.lt.s32.totalorder %s163, 127
          %s165 = scalar_select %p164, %s163, 127
          %s166 = smul.addr %s165, 4
          %s167 = scalar_lea.vmem %s1, %s166
          %s168 = smul.u32 64, %s11
        $region32: #{tpu_custom_call.1} parent=23 // pred_fallthru
          _
      $region24: #{tpu_custom_call.1} parent=5 // pred_fallthru
        _
      %p169 = scmp.le.s32.totalorder 1, %s11
      %p170 = scmp.lt.s32.totalorder %s11, 3
      %p171 = pnand %p169, %p170
      %p172 = pneg %p171
      // Predicated region
      $region33: #{tpu_custom_call.1} parent=5 // pred_check
        _
      $region34: #{tpu_custom_call.1} parent=5 // pred_check_branch
        %174 = sbr.rel (%p171) target = $region36
      $region35: #{tpu_custom_call.1} parent=5 // pred_region
        %s175 = ssub.s32 %s11, 1
        %s176 = smul.u32 4, %s16
        %p177 = scmp.lt.s32.totalorder %s176, 7
        %s178 = scalar_select %p177, %s176, 7
        %s179 = smul.addr %s178, 2
        %s180 = scalar_lea.vmem %s0, %s179
        %p181 = pneg %p37
        %p182 = pneg %p34
        %s183 = smul.u32 64, %s16
        %p184 = scmp.lt.s32.totalorder %s183, 127
        %s185 = scalar_select %p184, %s183, 127
        %s186 = smul.addr %s185, 4
        %s187 = scalar_lea.vmem %s1, %s186
        %p188 = pneg %p63
        %p189 = pneg %p60
        %p190 = pneg %p84
        %p191 = pneg %p81
        %p192 = pneg %p105
        %p193 = pneg %p102
        %p194 = pneg %p126
        %p195 = pneg %p123
        %s196 = smul.u32 4, %s16
        %p197 = scmp.lt.s32.totalorder %s196, 7
        %s198 = scalar_select %p197, %s196, 7
        %s199 = smul.addr %s198, 2
        %s200 = scalar_lea.vmem %s0, %s199
        %s201 = smul.u32 4, %s16
        %s202 = smul.u32 64, %s16
        %p203 = scmp.lt.s32.totalorder %s202, 127
        %s204 = scalar_select %p203, %s202, 127
        %s205 = smul.addr %s204, 4
        %s206 = scalar_lea.vmem %s1, %s205
        %s207 = smul.u32 64, %s16
        %p209 = scmp.eq.s32.totalorder %s16, 0
        // Predicated region
        $region37: #{tpu_custom_call.1} parent=35 // pred_check
          %p210 = pneg %p209
        $region38: #{tpu_custom_call.1} parent=35 // pred_check_branch
          %212 = sbr.rel (%p210) target = $region40
        $region39: #{tpu_custom_call.1} parent=35 // pred_region
          %vm213 = vcmask 254976
          %214 = vst.msk [vmem:[#allocation2] sm:$0x3] %vm213, 0.0
        $region40: #{tpu_custom_call.1} parent=35 // pred_fallthru
          _
        %v215 = vld [vmem:[#allocation2] sm:$0x3]
        %v216 = vld [vmem:[%s200] sm:$0xff]
        %v218 = vcombine.high %v216, %v216
        %v220 = vunpack.c.l.s4 1983009808
        %v221 = vunpack.c.0.s8 %v220
        %v222 = vlaneseq
        %v223 = vshrl.u32 %v222, 7
        %v224 = vsub.s32 %v221, %v223
        %v225 = vrot.slane %v216, %v224
        %v227 = vunpack.c.l.s4 1983009808
        %v228 = vunpack.c.0.s8 %v227
        %v229 = vlaneseq
        %v230 = vshrl.u32 %v229, 7
        %v231 = vsub.s32 %v228, %v230
        %v232 = vrot.slane %v218, %v231
        %v233 = vcombine.high %v225, %v225
        %v234 = vcombine.high %v232, %v232
        %v239 = vpack.c.bf16 %v225, %v225
        %v240 = vpack.c.bf16 %v233, %v233
        %v241 = vpack.c.bf16 %v232, %v232
        %v242 = vpack.c.bf16 %v234, %v234
        %v243 = vld [vmem:[%s206] sm:$0xf]
        %v244 = vld [vmem:[%s206 + $0x4] sm:$0xf]
        %v245 = vld [vmem:[%s206 + $0x8] sm:$0xf]
        %v246 = vld [vmem:[%s206 + $0xc] sm:$0xf]
        %v247 = vld [vmem:[%s206 + $0x10] sm:$0xf]
        %v248 = vld [vmem:[%s206 + $0x14] sm:$0xf]
        %v249 = vld [vmem:[%s206 + $0x18] sm:$0xf]
        %v250 = vld [vmem:[%s206 + $0x1c] sm:$0xf]
        %v251 = vld [vmem:[%s206 + $0x20] sm:$0xf]
        %v252 = vld [vmem:[%s206 + $0x24] sm:$0xf]
        %v253 = vld [vmem:[%s206 + $0x28] sm:$0xf]
        %v254 = vld [vmem:[%s206 + $0x2c] sm:$0xf]
        %v255 = vld [vmem:[%s206 + $0x30] sm:$0xf]
        %v256 = vld [vmem:[%s206 + $0x34] sm:$0xf]
        %v257 = vld [vmem:[%s206 + $0x38] sm:$0xf]
        %v258 = vld [vmem:[%s206 + $0x3c] sm:$0xf]
        %v259 = vld [vmem:[%s206 + $0x40] sm:$0xf]
        %v260 = vld [vmem:[%s206 + $0x44] sm:$0xf]
        %v261 = vld [vmem:[%s206 + $0x48] sm:$0xf]
        %v262 = vld [vmem:[%s206 + $0x4c] sm:$0xf]
        %v263 = vld [vmem:[%s206 + $0x50] sm:$0xf]
        %v264 = vld [vmem:[%s206 + $0x54] sm:$0xf]
        %v265 = vld [vmem:[%s206 + $0x58] sm:$0xf]
        %v266 = vld [vmem:[%s206 + $0x5c] sm:$0xf]
        %v267 = vld [vmem:[%s206 + $0x60] sm:$0xf]
        %v268 = vld [vmem:[%s206 + $0x64] sm:$0xf]
        %v269 = vld [vmem:[%s206 + $0x68] sm:$0xf]
        %v270 = vld [vmem:[%s206 + $0x6c] sm:$0xf]
        %v271 = vld [vmem:[%s206 + $0x70] sm:$0xf]
        %v272 = vld [vmem:[%s206 + $0x74] sm:$0xf]
        %v273 = vld [vmem:[%s206 + $0x78] sm:$0xf]
        %v274 = vld [vmem:[%s206 + $0x7c] sm:$0xf]
        %v275 = vld [vmem:[%s206 + $0x80] sm:$0xf]
        %v276 = vld [vmem:[%s206 + $0x84] sm:$0xf]
        %v277 = vld [vmem:[%s206 + $0x88] sm:$0xf]
        %v278 = vld [vmem:[%s206 + $0x8c] sm:$0xf]
        %v279 = vld [vmem:[%s206 + $0x90] sm:$0xf]
        %v280 = vld [vmem:[%s206 + $0x94] sm:$0xf]
        %v281 = vld [vmem:[%s206 + $0x98] sm:$0xf]
        %v282 = vld [vmem:[%s206 + $0x9c] sm:$0xf]
        %v283 = vld [vmem:[%s206 + $0xa0] sm:$0xf]
        %v284 = vld [vmem:[%s206 + $0xa4] sm:$0xf]
        %v285 = vld [vmem:[%s206 + $0xa8] sm:$0xf]
        %v286 = vld [vmem:[%s206 + $0xac] sm:$0xf]
        %v287 = vld [vmem:[%s206 + $0xb0] sm:$0xf]
        %v288 = vld [vmem:[%s206 + $0xb4] sm:$0xf]
        %v289 = vld [vmem:[%s206 + $0xb8] sm:$0xf]
        %v290 = vld [vmem:[%s206 + $0xbc] sm:$0xf]
        %v291 = vld [vmem:[%s206 + $0xc0] sm:$0xf]
        %v292 = vld [vmem:[%s206 + $0xc4] sm:$0xf]
        %v293 = vld [vmem:[%s206 + $0xc8] sm:$0xf]
        %v294 = vld [vmem:[%s206 + $0xcc] sm:$0xf]
        %v295 = vld [vmem:[%s206 + $0xd0] sm:$0xf]
        %v296 = vld [vmem:[%s206 + $0xd4] sm:$0xf]
        %v297 = vld [vmem:[%s206 + $0xd8] sm:$0xf]
        %v298 = vld [vmem:[%s206 + $0xdc] sm:$0xf]
        %v299 = vld [vmem:[%s206 + $0xe0] sm:$0xf]
        %v300 = vld [vmem:[%s206 + $0xe4] sm:$0xf]
        %v301 = vld [vmem:[%s206 + $0xe8] sm:$0xf]
        %v302 = vld [vmem:[%s206 + $0xec] sm:$0xf]
        %v303 = vld [vmem:[%s206 + $0xf0] sm:$0xf]
        %v304 = vld [vmem:[%s206 + $0xf4] sm:$0xf]
        %v305 = vld [vmem:[%s206 + $0xf8] sm:$0xf]
        %v306 = vld [vmem:[%s206 + $0xfc] sm:$0xf]
        %v371 = vunpack.c.l.b16 %v243
        %v372 = vunpack.c.l.b16 %v244
        %v373 = vunpack.c.l.b16 %v245
        %v374 = vunpack.c.l.b16 %v246
        %v375 = vunpack.c.l.b16 %v247
        %v376 = vunpack.c.l.b16 %v248
        %v377 = vunpack.c.l.b16 %v249
        %v378 = vunpack.c.l.b16 %v250
        %v379 = vunpack.c.l.b16 %v251
        %v380 = vunpack.c.l.b16 %v252
        %v381 = vunpack.c.l.b16 %v253
        %v382 = vunpack.c.l.b16 %v254
        %v383 = vunpack.c.l.b16 %v255
        %v384 = vunpack.c.l.b16 %v256
        %v385 = vunpack.c.l.b16 %v257
        %v386 = vunpack.c.l.b16 %v258
        %v387 = vunpack.c.l.b16 %v259
        %v388 = vunpack.c.l.b16 %v260
        %v389 = vunpack.c.l.b16 %v261
        %v390 = vunpack.c.l.b16 %v262
        %v391 = vunpack.c.l.b16 %v263
        %v392 = vunpack.c.l.b16 %v264
        %v393 = vunpack.c.l.b16 %v265
        %v394 = vunpack.c.l.b16 %v266
        %v395 = vunpack.c.l.b16 %v267
        %v396 = vunpack.c.l.b16 %v268
        %v397 = vunpack.c.l.b16 %v269
        %v398 = vunpack.c.l.b16 %v270
        %v399 = vunpack.c.l.b16 %v271
        %v400 = vunpack.c.l.b16 %v272
        %v401 = vunpack.c.l.b16 %v273
        %v402 = vunpack.c.l.b16 %v274
        %v403 = vunpack.c.l.b16 %v275
        %v404 = vunpack.c.l.b16 %v276
        %v405 = vunpack.c.l.b16 %v277
        %v406 = vunpack.c.l.b16 %v278
        %v407 = vunpack.c.l.b16 %v279
        %v408 = vunpack.c.l.b16 %v280
        %v409 = vunpack.c.l.b16 %v281
        %v410 = vunpack.c.l.b16 %v282
        %v411 = vunpack.c.l.b16 %v283
        %v412 = vunpack.c.l.b16 %v284
        %v413 = vunpack.c.l.b16 %v285
        %v414 = vunpack.c.l.b16 %v286
        %v415 = vunpack.c.l.b16 %v287
        %v416 = vunpack.c.l.b16 %v288
        %v417 = vunpack.c.l.b16 %v289
        %v418 = vunpack.c.l.b16 %v290
        %v419 = vunpack.c.l.b16 %v291
        %v420 = vunpack.c.l.b16 %v292
        %v421 = vunpack.c.l.b16 %v293
        %v422 = vunpack.c.l.b16 %v294
        %v423 = vunpack.c.l.b16 %v295
        %v424 = vunpack.c.l.b16 %v296
        %v425 = vunpack.c.l.b16 %v297
        %v426 = vunpack.c.l.b16 %v298
        %v427 = vunpack.c.l.b16 %v299
        %v428 = vunpack.c.l.b16 %v300
        %v429 = vunpack.c.l.b16 %v301
        %v430 = vunpack.c.l.b16 %v302
        %v431 = vunpack.c.l.b16 %v303
        %v432 = vunpack.c.l.b16 %v304
        %v433 = vunpack.c.l.b16 %v305
        %v434 = vunpack.c.l.b16 %v306
        %v435 = vpack.c.b16 %v372, %v371
        %v436 = vpack.c.b16 %v374, %v373
        %v437 = vpack.c.b16 %v376, %v375
        %v438 = vpack.c.b16 %v378, %v377
        %v439 = vpack.c.b16 %v380, %v379
        %v440 = vpack.c.b16 %v382, %v381
        %v441 = vpack.c.b16 %v384, %v383
        %v442 = vpack.c.b16 %v386, %v385
        %v443 = vpack.c.b16 %v388, %v387
        %v444 = vpack.c.b16 %v390, %v389
        %v445 = vpack.c.b16 %v392, %v391
        %v446 = vpack.c.b16 %v394, %v393
        %v447 = vpack.c.b16 %v396, %v395
        %v448 = vpack.c.b16 %v398, %v397
        %v449 = vpack.c.b16 %v400, %v399
        %v450 = vpack.c.b16 %v402, %v401
        %v451 = vpack.c.b16 %v404, %v403
        %v452 = vpack.c.b16 %v406, %v405
        %v453 = vpack.c.b16 %v408, %v407
        %v454 = vpack.c.b16 %v410, %v409
        %v455 = vpack.c.b16 %v412, %v411
        %v456 = vpack.c.b16 %v414, %v413
        %v457 = vpack.c.b16 %v416, %v415
        %v458 = vpack.c.b16 %v418, %v417
        %v459 = vpack.c.b16 %v420, %v419
        %v460 = vpack.c.b16 %v422, %v421
        %v461 = vpack.c.b16 %v424, %v423
        %v462 = vpack.c.b16 %v426, %v425
        %v463 = vpack.c.b16 %v428, %v427
        %v464 = vpack.c.b16 %v430, %v429
        %v465 = vpack.c.b16 %v432, %v431
        %v466 = vpack.c.b16 %v434, %v433
        %499 = vmatprep.subr.bf16.mxu0 0
        %500 = vmatpush1.bf16.msra.mxu0 %v435
        %501 = vmatprep.subr.bf16.mxu0 0
        %502 = vmatpush1.bf16.msra.mxu0 %v436
        %503 = vmatprep.subr.bf16.mxu0 0
        %504 = vmatpush1.bf16.msra.mxu0 %v437
        %505 = vmatprep.subr.bf16.mxu0 0
        %506 = vmatpush1.bf16.msra.mxu0 %v438
        %507 = vmatprep.subr.bf16.mxu0 0
        %508 = vmatpush1.bf16.msra.mxu0 %v439
        %509 = vmatprep.subr.bf16.mxu0 0
        %510 = vmatpush1.bf16.msra.mxu0 %v440
        %511 = vmatprep.subr.bf16.mxu0 0
        %512 = vmatpush1.bf16.msra.mxu0 %v441
        %513 = vmatprep.subr.bf16.mxu0 0
        %514 = vmatpush1.bf16.msra.mxu0 %v442
        %515 = vmatprep.subr.bf16.mxu0 0
        %516 = vmatpush1.bf16.msra.mxu0 %v443
        %517 = vmatprep.subr.bf16.mxu0 0
        %518 = vmatpush1.bf16.msra.mxu0 %v444
        %519 = vmatprep.subr.bf16.mxu0 0
        %520 = vmatpush1.bf16.msra.mxu0 %v445
        %521 = vmatprep.subr.bf16.mxu0 0
        %522 = vmatpush1.bf16.msra.mxu0 %v446
        %523 = vmatprep.subr.bf16.mxu0 0
        %524 = vmatpush1.bf16.msra.mxu0 %v447
        %525 = vmatprep.subr.bf16.mxu0 0
        %526 = vmatpush1.bf16.msra.mxu0 %v448
        %527 = vmatprep.subr.bf16.mxu0 0
        %528 = vmatpush1.bf16.msra.mxu0 %v449
        %529 = vmatprep.subr.bf16.mxu0 0
        %530 = vmatpush1.bf16.msra.mxu0 %v450
        %531 = vmatprep.mubr.bf16.mxu0 %v240
        %532 = vmatmul.mubr.bf16.gmra.mrb[0].mxu0 %v239
        %v533 = vpop.f32.mrb[0].mxu0
        %v534 = vadd.f32 0.0, %v533
        %v535 = vpop.f32.mrb[0].mxu0
        %v536 = vpop.f32.mrb[0].mxu0
        %v537 = vpop.f32.mrb[0].mxu0
        %538 = vdwg.mxu0
        %539 = vmatprep.subr.bf16.mxu0 0
        %540 = vmatpush1.bf16.msra.mxu0 %v451
        %541 = vmatprep.subr.bf16.mxu0 0
        %542 = vmatpush1.bf16.msra.mxu0 %v452
        %543 = vmatprep.subr.bf16.mxu0 0
        %544 = vmatpush1.bf16.msra.mxu0 %v453
        %545 = vmatprep.subr.bf16.mxu0 0
        %546 = vmatpush1.bf16.msra.mxu0 %v454
        %547 = vmatprep.subr.bf16.mxu0 0
        %548 = vmatpush1.bf16.msra.mxu0 %v455
        %549 = vmatprep.subr.bf16.mxu0 0
        %550 = vmatpush1.bf16.msra.mxu0 %v456
        %551 = vmatprep.subr.bf16.mxu0 0
        %552 = vmatpush1.bf16.msra.mxu0 %v457
        %553 = vmatprep.subr.bf16.mxu0 0
        %554 = vmatpush1.bf16.msra.mxu0 %v458
        %555 = vmatprep.subr.bf16.mxu0 0
        %556 = vmatpush1.bf16.msra.mxu0 %v459
        %557 = vmatprep.subr.bf16.mxu0 0
        %558 = vmatpush1.bf16.msra.mxu0 %v460
        %559 = vmatprep.subr.bf16.mxu0 0
        %560 = vmatpush1.bf16.msra.mxu0 %v461
        %561 = vmatprep.subr.bf16.mxu0 0
        %562 = vmatpush1.bf16.msra.mxu0 %v462
        %563 = vmatprep.subr.bf16.mxu0 0
        %564 = vmatpush1.bf16.msra.mxu0 %v463
        %565 = vmatprep.subr.bf16.mxu0 0
        %566 = vmatpush1.bf16.msra.mxu0 %v464
        %567 = vmatprep.subr.bf16.mxu0 0
        %568 = vmatpush1.bf16.msra.mxu0 %v465
        %569 = vmatprep.subr.bf16.mxu0 0
        %570 = vmatpush1.bf16.msra.mxu0 %v466
        %571 = vmatprep.mubr.bf16.mxu0 %v242
        %572 = vmatmul.mubr.bf16.gmra.mrb[0].mxu0 %v241
        %v573 = vpop.f32.mrb[0].mxu0
        %v574 = vadd.f32 %v534, %v573
        %v575 = vpop.f32.mrb[0].mxu0
        %v576 = vpop.f32.mrb[0].mxu0
        %v577 = vpop.f32.mrb[0].mxu0
        %578 = vdwg.mxu0
        %v579 = vadd.f32 %v215, %v574
        %vm580 = vcmask 254976
        %581 = vst.msk [vmem:[#allocation2] sm:$0x3] %vm580, %v579
        %p582 = scmp.eq.s32.totalorder %s16, 1
        // Predicated region
        $region41: #{tpu_custom_call.1} parent=35 // pred_check
          %p583 = pneg %p582
        $region42: #{tpu_custom_call.1} parent=35 // pred_check_branch
          %585 = sbr.rel (%p583) target = $region44
        $region43: #{tpu_custom_call.1} parent=35 // pred_region
          %v586 = vld [vmem:[#allocation2] sm:$0x3]
          %v587 = vld [vmem:[%s2] sm:$0x1]
          %v589 = vlaneseq
          %v590 = vshrl.u32 %v589, 7
          %v591 = vsub.s32 0, %v590
          %v592 = vrot.slane %v587, %v591
          %v594 = vadd.f32 %v586, %v592
          %v595 = vpack.c.bf16 %v594, %v594
          %v596 = vld [vmem:[%s3] sm:$0xf]
          %v597 = vld [vmem:[%s3 + $0x4] sm:$0xf]
          %v598 = vld [vmem:[%s3 + $0x8] sm:$0xf]
          %v599 = vld [vmem:[%s3 + $0xc] sm:$0xf]
          %v604 = vunpack.c.l.b16 %v596
          %v605 = vunpack.c.l.b16 %v597
          %v606 = vunpack.c.l.b16 %v598
          %v607 = vunpack.c.l.b16 %v599
          %v608 = vpack.c.b16 %v605, %v604
          %v609 = vpack.c.b16 %v607, %v606
          %vm612 = vcmask 261120
          %v614 = vsel %vm612, %v595, 0
          %616 = vmatprep.subr.bf16.mxu0 0
          %617 = vmatpush1.bf16.msra.mxu0 %v608
          %618 = vmatprep.subr.bf16.mxu0 0
          %619 = vmatpush1.bf16.msra.mxu0 %v609
          %620 = vmatprep.subr.bf16.mxu0 0
          %621 = vmatpush1.bf16.msra.mxu0 0
          %622 = vmatprep.subr.bf16.mxu0 0
          %623 = vmatpush1.bf16.msra.mxu0 0
          %624 = vmatprep.subr.bf16.mxu0 0
          %625 = vmatpush1.bf16.msra.mxu0 0
          %626 = vmatprep.subr.bf16.mxu0 0
          %627 = vmatpush1.bf16.msra.mxu0 0
          %628 = vmatprep.subr.bf16.mxu0 0
          %629 = vmatpush1.bf16.msra.mxu0 0
          %630 = vmatprep.subr.bf16.mxu0 0
          %631 = vmatpush1.bf16.msra.mxu0 0
          %632 = vmatprep.subr.bf16.mxu0 0
          %633 = vmatpush1.bf16.msra.mxu0 0
          %634 = vmatprep.subr.bf16.mxu0 0
          %635 = vmatpush1.bf16.msra.mxu0 0
          %636 = vmatprep.subr.bf16.mxu0 0
          %637 = vmatpush1.bf16.msra.mxu0 0
          %638 = vmatprep.subr.bf16.mxu0 0
          %639 = vmatpush1.bf16.msra.mxu0 0
          %640 = vmatprep.subr.bf16.mxu0 0
          %641 = vmatpush1.bf16.msra.mxu0 0
          %642 = vmatprep.subr.bf16.mxu0 0
          %643 = vmatpush1.bf16.msra.mxu0 0
          %644 = vmatprep.subr.bf16.mxu0 0
          %645 = vmatpush1.bf16.msra.mxu0 0
          %646 = vmatprep.subr.bf16.mxu0 0
          %647 = vmatpush1.bf16.msra.mxu0 0
          %648 = vmatprep.mubr.bf16.mxu0 0
          %649 = vmatmul.mubr.bf16.gmra.mrb[0].mxu0 %v614
          %v650 = vpop.f32.mrb[0].mxu0
          %v651 = vadd.f32 0.0, %v650
          %v652 = vpop.f32.mrb[0].mxu0
          %v653 = vpop.f32.mrb[0].mxu0
          %v654 = vpop.f32.mrb[0].mxu0
          %655 = vdwg.mxu0
          %vm656 = vcmask 123904
          %657 = vst.msk [vmem:[#allocation3] sm:$0x3] %vm656, %v651
        $region44: #{tpu_custom_call.1} parent=35 // pred_fallthru
          _
        // Predicated region
        $region45: #{tpu_custom_call.1} parent=35 // pred_check
          %p658 = pneg %p123
        $region46: #{tpu_custom_call.1} parent=35 // pred_check_branch
          %660 = sbr.rel (%p658) target = $region48
        $region47: #{tpu_custom_call.1} parent=35 // pred_region
          %s662 = ssub.s32 32, 32
          %663 = vsyncadd [#allocation4], %s662
          %s665 = sshll.u32 [#allocation3], 4
          %s666 = int_to_ptr.vmem [resolvable:$true] %s665
          %668 = dma.vmem_to_hbm [thread:$0]  %s666, 32, %s4, [#allocation4]
        $region48: #{tpu_custom_call.1} parent=35 // pred_fallthru
          _
        // Predicated region
        $region49: #{tpu_custom_call.1} parent=35 // pred_check
          %p669 = pneg %p123
        $region50: #{tpu_custom_call.1} parent=35 // pred_check_branch
          %671 = sbr.rel (%p669) target = $region52
        $region51: #{tpu_custom_call.1} parent=35 // pred_region
          %672 = dma.done [#allocation4], 32
        $region52: #{tpu_custom_call.1} parent=35 // pred_fallthru
          _
      $region36: #{tpu_custom_call.1} parent=5 // pred_fallthru
        _
      %p673 = scmp.le.s32.totalorder 2, %s11
      // Predicated region
      $region53: #{tpu_custom_call.1} parent=5 // pred_check
        %p674 = pneg %p673
      $region54: #{tpu_custom_call.1} parent=5 // pred_check_branch
        %676 = sbr.rel (%p674) target = $region56
      $region55: #{tpu_custom_call.1} parent=5 // pred_region
        %s677 = ssub.s32 %s11, 2
      $region56: #{tpu_custom_call.1} parent=5 // pred_fallthru
        _
    $region6: #{tpu_custom_call.1} parent=1 // loop_footer
      %s15 = sadd.s32 1, %s11
    $region7: #{tpu_custom_call.1} parent=1 // loop_footer_branch
      %10 = sbr.rel target = $region3
    $region8: #{tpu_custom_call.1} parent=1 // loop_exit
      _
    %678 = vsyncpa [#allocation4], 1
    %s679 = scalar_lea.sflag [#allocation4], 1
    %680 = vsyncpa %s679, 1

</llo_original>
